<compile_context>
chip_gen: v7x
topology: tpu7x:2x2x1
jax: 0.10.0
libtpu: 0.0.40
codegen_flags: <defaults>
</compile_context>

<pallas_src>
import jax
import jax.numpy as jnp
from jax.experimental import pallas as pl
from jax.experimental.pallas import tpu as pltpu


def _round_up(v, m):
    return ((v + m - 1) // m) * m


def _crossbar_kernel(x_ref, w_ref, b_ref, o_ref):
    """One (batch_tile, out_tile) output block; grid axis 2 walks input tiles.

    The output block is resident across the k axis (its index_map ignores k),
    so we accumulate directly into the f32 o_ref -- no scratch accumulator and
    no final copy.  The bias seeds the accumulator at k == 0 (the reduction is
    linear, so this equals adding it at the end).
    """
    k = pl.program_id(2)

    @pl.when(k == 0)
    def _():
        o_ref[...] = jnp.broadcast_to(b_ref[...], o_ref.shape)

    # Crossbar tile: partial output = tile_x @ tile_w, accumulated in f32 (MXU).
    o_ref[...] += jnp.dot(
        x_ref[...], w_ref[...], preferred_element_type=jnp.float32
    )


def crossbar_linear(
    x,
    weight,
    bias,
    *,
    max_array_size=784,   # crossbar array size: semantic only (IdealModel path
                          # is tile-size invariant), NOT used for TPU tiling.
    dot_dtype=None,       # e.g. jnp.bfloat16 to halve the weight HBM stream
    tile_m=256,           # cap on batch tile (sublane-aligned)
    tile_k=512,           # cap on in_features tile (256-aligned)
    tile_n=1024,          # cap on out_features tile (256-aligned, lane-dense)
):
    """Pallas implementation of CustomLayer.forward (IdealModel path).

    x:      (batch, in_features)          float
    weight: (in_features, out_features)   float
    bias:   (out_features,)               float
    returns (batch, out_features)         float32
    """
    batch, in_features = x.shape
    in_f, out_features = weight.shape
    assert in_f == in_features
    assert bias.shape == (out_features,)
    del max_array_size  # see note above: math is independent of the array size

    # --- TPU-driven tile sizes --------------------------------------------
    tm = min(_round_up(batch, 8), tile_m)
    tk = min(_round_up(in_features, 256), tile_k)
    tn = min(_round_up(out_features, 256), tile_n)

    pm = _round_up(batch, tm)
    pk = _round_up(in_features, tk)
    pn = _round_up(out_features, tn)

    # v7x megacore: expose >= 2 "parallel" (i, j) blocks when possible so the
    # two TensorCores both get work (no effect on v5e/v6e correctness/perf).
    if (pm // tm) * (pn // tn) < 2 and tn >= 512:
        tn //= 2
        pn = _round_up(out_features, tn)

    # --- optional narrow dtype for the dot inputs (bandwidth) --------------
    xd = x if dot_dtype is None else x.astype(dot_dtype)
    wd = weight if dot_dtype is None else weight.astype(dot_dtype)

    # --- zero-pad to tile multiples (zeros contribute nothing to the sum) ---
    if (pm, pk) != (batch, in_features):
        xd = jnp.pad(xd, ((0, pm - batch), (0, pk - in_features)))
    if (pk, pn) != (in_features, out_features):
        wd = jnp.pad(wd, ((0, pk - in_features), (0, pn - out_features)))
    bias2d = bias.astype(jnp.float32).reshape(1, out_features)
    if pn != out_features:
        bias2d = jnp.pad(bias2d, ((0, 0), (0, pn - out_features)))

    grid = (pm // tm, pn // tn, pk // tk)

    # --- VMEM budget (explicit, v7x-safe) -----------------------------------
    in_itemsize = jnp.dtype(xd.dtype).itemsize
    vmem_bytes = (
        2 * (tm * tk + tk * tn) * in_itemsize   # double-buffered x & w tiles
        + 2 * tn * 4                            # bias tile
        + 2 * tm * tn * 4                       # resident f32 output block
    )
    vmem_limit = int(min(64 << 20, max(32 << 20, 2 * vmem_bytes)))

    cost = pl.CostEstimate(
        flops=2 * pm * pk * pn,
        transcendentals=0,
        bytes_accessed=(
            xd.size * in_itemsize
            + wd.size * in_itemsize * (pm // tm)   # weight re-streamed per i block
            + bias2d.size * 4
            + pm * pn * 4
        ),
    )

    out = pl.pallas_call(
        _crossbar_kernel,
        out_shape=jax.ShapeDtypeStruct((pm, pn), jnp.float32),
        grid_spec=pltpu.PrefetchScalarGridSpec(
            num_scalar_prefetch=0,
            grid=grid,
            in_specs=[
                pl.BlockSpec((tm, tk), lambda i, j, k: (i, k)),   # x tile
                pl.BlockSpec((tk, tn), lambda i, j, k: (k, j)),   # weight tile
                pl.BlockSpec((1, tn), lambda i, j, k: (0, j)),    # bias tile
            ],
            out_specs=pl.BlockSpec((tm, tn), lambda i, j, k: (i, j)),
        ),
        compiler_params=pltpu.CompilerParams(
            dimension_semantics=("parallel", "parallel", "arbitrary"),
            vmem_limit_bytes=vmem_limit,
        ),
        cost_estimate=cost,
    )(xd, wd, bias2d)

    if (pm, pn) != (batch, out_features):
        out = out[:batch, :out_features]
    return out


if __name__ == "__main__":
    key = jax.random.PRNGKey(0)
    kx, kw, kb = jax.random.split(key, 3)

    # Small shapes consistent with the module (a crossbar-tiled linear layer).
    batch = 8
    in_features = 512
    out_features = 512
    max_array_size = 784  # module default; IdealModel result is array-size invariant

    x = jax.random.normal(kx, (batch, in_features), dtype=jnp.float32)
    weight = jax.random.normal(kw, (in_features, out_features), dtype=jnp.float32) * 0.05
    bias = jax.random.normal(kb, (out_features,), dtype=jnp.float32) * 0.1

    out = crossbar_linear(x, weight, bias, max_array_size=max_array_size)
    out = jax.block_until_ready(out)

    # reference: the module's semantics, x @ weight + bias
    ref = x @ weight + bias
    assert out.shape == (batch, out_features)
    assert jnp.allclose(out, ref, atol=1e-3, rtol=1e-3), "mismatch vs reference"

    print("KERNEL_OK")
</pallas_src>

<mosaic_0001>
module attributes {stable_mosaic.version = 11 : i64} {
  func.func @_crossbar_kernel(%arg0: i32, %arg1: i32, %arg2: i32, %arg3: memref<8x512xf32, #tpu.memory_space<vmem>>, %arg4: memref<512x256xf32, #tpu.memory_space<vmem>>, %arg5: memref<1x256xf32, #tpu.memory_space<vmem>>, %arg6: memref<8x256xf32, #tpu.memory_space<vmem>>) attributes {dimension_semantics = [#tpu.dimension_semantics<parallel>, #tpu.dimension_semantics<parallel>, #tpu.dimension_semantics<arbitrary>], iteration_bounds = array<i64: 1, 2, 1>, scalar_prefetch = 0 : i64, scratch_operands = 0 : i64, tpu.core_type = #tpu.core_type<tc>, window_params = [{transform_indices = @transform_0, window_bounds = array<i64: 8, 512>}, {transform_indices = @transform_1, window_bounds = array<i64: 512, 256>}, {transform_indices = @transform_2, window_bounds = array<i64: 1, 256>}, {transform_indices = @transform_3, window_bounds = array<i64: 8, 256>}]} {
    %c0_i32 = arith.constant 0 : i32
    %0 = arith.cmpi eq, %arg2, %c0_i32 : i32
    %1 = arith.extui %0 : i1 to i32
    %c0_i32_0 = arith.constant 0 : i32
    %2 = arith.cmpi ne, %1, %c0_i32_0 : i32
    scf.if %2 {
      %c0_8 = arith.constant 0 : index
      %c0_9 = arith.constant 0 : index
      %9 = vector.load %arg5[%c0_8, %c0_9] : memref<1x256xf32, #tpu.memory_space<vmem>>, vector<1x256xf32>
      %10 = vector.shape_cast %9 : vector<1x256xf32> to vector<1x256xf32>
      %11 = vector.broadcast %10 : vector<1x256xf32> to vector<8x256xf32>
      %c0_10 = arith.constant 0 : index
      %c0_11 = arith.constant 0 : index
      %12 = vector.load %arg6[%c0_10, %c0_11] : memref<8x256xf32, #tpu.memory_space<vmem>>, vector<8x256xf32>
      tpu.vector_store %arg6[%c0_10, %c0_11], %11 {strides = array<i32>} : memref<8x256xf32, #tpu.memory_space<vmem>>, vector<8x256xf32>,
    } else {
    }
    %c0 = arith.constant 0 : index
    %c0_1 = arith.constant 0 : index
    %3 = vector.load %arg6[%c0, %c0_1] : memref<8x256xf32, #tpu.memory_space<vmem>>, vector<8x256xf32>
    %c0_2 = arith.constant 0 : index
    %c0_3 = arith.constant 0 : index
    %4 = vector.load %arg3[%c0_2, %c0_3] : memref<8x512xf32, #tpu.memory_space<vmem>>, vector<8x512xf32>
    %c0_4 = arith.constant 0 : index
    %c0_5 = arith.constant 0 : index
    %5 = vector.load %arg4[%c0_4, %c0_5] : memref<512x256xf32, #tpu.memory_space<vmem>>, vector<512x256xf32>
    %cst = arith.constant dense<0.000000e+00> : vector<8x256xf32>
    %6 = tpu.matmul %4, %5, %cst {dimension_numbers = #tpu.dot_dimension_numbers<[1], [0], [0], [1], [0, 0, 1, 1], [], []>} : vector<8x512xf32>, vector<512x256xf32>, vector<8x256xf32> -> vector<8x256xf32>
    %7 = arith.addf %3, %6 : vector<8x256xf32>
    %c0_6 = arith.constant 0 : index
    %c0_7 = arith.constant 0 : index
    %8 = vector.load %arg6[%c0_6, %c0_7] : memref<8x256xf32, #tpu.memory_space<vmem>>, vector<8x256xf32>
    tpu.vector_store %arg6[%c0_6, %c0_7], %7 {strides = array<i32>} : memref<8x256xf32, #tpu.memory_space<vmem>>, vector<8x256xf32>,
    return
  }
  func.func @transform_0(%arg0: i32, %arg1: i32, %arg2: i32) -> (i32, i32) {
    %c0_i32 = arith.constant 0 : i32
    return %arg0, %arg2 : i32, i32
  }
  func.func @transform_1(%arg0: i32, %arg1: i32, %arg2: i32) -> (i32, i32) {
    %c0_i32 = arith.constant 0 : i32
    return %arg2, %arg1 : i32, i32
  }
  func.func @transform_2(%arg0: i32, %arg1: i32, %arg2: i32) -> (i32, i32) {
    %c0_i32 = arith.constant 0 : i32
    %c0_i32_0 = arith.constant 0 : i32
    return %c0_i32, %arg1 : i32, i32
  }
  func.func @transform_3(%arg0: i32, %arg1: i32, %arg2: i32) -> (i32, i32) {
    %c0_i32 = arith.constant 0 : i32
    return %arg0, %arg1 : i32, i32
  }
}

</mosaic_0001>

<llo_original>
// kernel: tpu_custom_call.1
$region0: #{tpu_custom_call.1}
  #allocation0 [shape = 'u32[]', space=smem, size = 0x4, offset = 0x4, fixed_abs, tag = 'smem constant byte address 0x4 - core index']
  #allocation1 [shape = 'u32[144,128]{1,0:T(1,128)}', space=vmem, size = 0x12000, scoped, tag = 'internal scratch']
  %s0 = inlined_call_operand.hbm [shape: f32[8,512], index: 0, kind: input, shape index: {}]
  %s1 = inlined_call_operand.hbm [shape: f32[512,512], index: 1, kind: input, shape index: {}]
  %s2 = inlined_call_operand.vmem [shape: f32[1,512], index: 2, kind: input, shape index: {}]
  %s3 = inlined_call_operand.hbm [shape: f32[8,512], index: 3, kind: output, shape index: {}]
  %s4 = sld [smem:[#allocation0]]
  $region57: #{tpu_custom_call.1} parent=0
    _
  %s6 = ssub.s32 1, %s4
  %s7 = scalar_select 0, %s6, %s4
  $region1: #{tpu_custom_call.1} parent=0
    #allocation2 [shape = 'u8[16384]{0}', space=vmem, size = 0x4000, scoped, tag = 'input window, operand 0, single buffered']
    #allocation3 [shape = 's32[2]{0}', space=sflag, size = 0x8, scoped, tag = 'scoped memory for tpu_custom_call.1']
    #allocation4 [shape = 's32[2]{0}', space=sflag, size = 0x8, scoped, tag = 'scoped memory for tpu_custom_call.1']
    #allocation5 [shape = 'u8[1048576]{0}', space=vmem, size = 0x100000, scoped, tag = 'input window, operand 1']
    #allocation6 [shape = 's32[2]{0}', space=sflag, size = 0x8, scoped, tag = 'scoped memory for tpu_custom_call.1']
    #allocation7 [shape = 'u8[16384]{0}', space=vmem, size = 0x4000, scoped, tag = 'output window, operand 0']
    %8 = vsyncpa [#allocation3], 0
    %9 = vsyncpa [#allocation6], 0
    %s10 = scalar_lea.sflag [#allocation6], 1
    %11 = vsyncpa %s10, 0
    %12 = vsyncpa [#allocation4], 0
    %s13 = scalar_lea.sflag [#allocation4], 1
    %14 = vsyncpa %s13, 0
    loop: start=0, step=1, limit=4
    $region2: #{tpu_custom_call.1} parent=1 // loop_pre_header
      _
    $region3: #{tpu_custom_call.1} parent=1 // loop_header
      %s16 = sphi 0, %s20
      %p17 = scmp.ge.s32.totalorder %s16, 4
      %s23 = sphi 0, %s42
      %s24 = sphi 0, %s38
      %s25 = sphi 0, %s34
      %s26 = sphi 0, %s23
      %s27 = sphi 0, %s24
      %s28 = sphi 0, %s25
      %s29 = sphi 0, %s26
      %s30 = sphi 0, %s27
      %s31 = sphi 0, %s28
      %s47 = sphi 0, %s49
      %s50 = sphi 0, %s47
      %s51 = sphi 0, %s50
      %s67 = sphi 0, %s51
      %s75 = sphi 0, %s77
      %s78 = sphi 0, %s75
      %s79 = sphi 0, %s78
      %s95 = sphi 0, %s79
      %s101 = sphi 0, %s103
      %s104 = sphi 0, %s101
      %s105 = sphi 0, %s104
      %s121 = sphi 0, %s105
      %s129 = sphi 0, %s131
      %s132 = sphi 0, %s129
      %s133 = sphi 0, %s132
      %s149 = sphi 0, %s133
    $region4: #{tpu_custom_call.1} parent=1 // loop_header_branch
      %19 = sbr.rel (%p17) target = $region8
    $region5: #{tpu_custom_call.1} parent=1 // loop_body
      %s21 = ssub.s32 %s16, 1
      %s22 = ssub.s32 %s16, 2
      %s32 = sadd.s32 1, %s25
      %p33 = scmp.ge.s32.totalorder %s32, 1
      %s34 = scalar_select %p33, 0, %s32
      %s35 = sadd.s32 1, %s24
      %s36 = scalar_select %p33, %s35, %s24
      %p37 = scmp.ge.s32.totalorder %s36, 2
      %s38 = scalar_select %p37, 0, %s36
      %s39 = sadd.s32 1, %s23
      %s40 = scalar_select %p37, %s39, %s23
      %p41 = scmp.ge.s32.totalorder %s40, 1
      %s42 = scalar_select %p41, 0, %s40
      %s43 = ssub.s32 %s23, %s42
      %s44 = ssub.s32 %s25, %s34
      %s45 = sor.u32 %s43, %s44
      %p46 = scmp.eq.s32.totalorder %s45, 0
      %s48 = sadd.s32 %s47, 1
      %s49 = scalar_select %p46, %s47, %s48
      %p52 = pneg %p46
      %p53 = scmp.eq.s32.totalorder %s16, 1
      %p54 = por %p52, %p53
      %p55 = scmp.ne.s32.totalorder %s47, %s50
      %p56 = scmp.eq.s32.totalorder %s16, 0
      %p57 = por %p55, %p56
      %p58 = scmp.ne.s32.totalorder %s47, %s50
      %p59 = scmp.eq.s32.totalorder %s21, 1
      %p60 = por %p58, %p59
      %p61 = scmp.ne.s32.totalorder %s50, %s51
      %p62 = scmp.eq.s32.totalorder %s21, 0
      %p63 = por %p61, %p62
      %p64 = scmp.ne.s32.totalorder %s50, %s51
      %p65 = scmp.eq.s32.totalorder %s22, 1
      %p66 = por %p64, %p65
      %p68 = scmp.ne.s32.totalorder %s51, %s67
      %p69 = scmp.eq.s32.totalorder %s22, 0
      %p70 = por %p68, %p69
      %s71 = ssub.s32 %s25, %s34
      %s72 = ssub.s32 %s24, %s38
      %s73 = sor.u32 %s71, %s72
      %p74 = scmp.eq.s32.totalorder %s73, 0
      %s76 = sadd.s32 %s75, 1
      %s77 = scalar_select %p74, %s75, %s76
      %p80 = pneg %p74
      %p81 = scmp.eq.s32.totalorder %s16, 1
      %p82 = por %p80, %p81
      %p83 = scmp.ne.s32.totalorder %s75, %s78
      %p84 = scmp.eq.s32.totalorder %s16, 0
      %p85 = por %p83, %p84
      %p86 = scmp.ne.s32.totalorder %s75, %s78
      %p87 = scmp.eq.s32.totalorder %s21, 1
      %p88 = por %p86, %p87
      %p89 = scmp.ne.s32.totalorder %s78, %s79
      %p90 = scmp.eq.s32.totalorder %s21, 0
      %p91 = por %p89, %p90
      %p92 = scmp.ne.s32.totalorder %s78, %s79
      %p93 = scmp.eq.s32.totalorder %s22, 1
      %p94 = por %p92, %p93
      %p96 = scmp.ne.s32.totalorder %s79, %s95
      %p97 = scmp.eq.s32.totalorder %s22, 0
      %p98 = por %p96, %p97
      %s99 = ssub.s32 %s24, %s38
      %p100 = scmp.eq.s32.totalorder %s99, 0
      %s102 = sadd.s32 %s101, 1
      %s103 = scalar_select %p100, %s101, %s102
      %p106 = pneg %p100
      %p107 = scmp.eq.s32.totalorder %s16, 1
      %p108 = por %p106, %p107
      %p109 = scmp.ne.s32.totalorder %s101, %s104
      %p110 = scmp.eq.s32.totalorder %s16, 0
      %p111 = por %p109, %p110
      %p112 = scmp.ne.s32.totalorder %s101, %s104
      %p113 = scmp.eq.s32.totalorder %s21, 1
      %p114 = por %p112, %p113
      %p115 = scmp.ne.s32.totalorder %s104, %s105
      %p116 = scmp.eq.s32.totalorder %s21, 0
      %p117 = por %p115, %p116
      %p118 = scmp.ne.s32.totalorder %s104, %s105
      %p119 = scmp.eq.s32.totalorder %s22, 1
      %p120 = por %p118, %p119
      %p122 = scmp.ne.s32.totalorder %s105, %s121
      %p123 = scmp.eq.s32.totalorder %s22, 0
      %p124 = por %p122, %p123
      %s125 = ssub.s32 %s23, %s42
      %s126 = ssub.s32 %s24, %s38
      %s127 = sor.u32 %s125, %s126
      %p128 = scmp.eq.s32.totalorder %s127, 0
      %s130 = sadd.s32 %s129, 1
      %s131 = scalar_select %p128, %s129, %s130
      %p134 = pneg %p128
      %p135 = scmp.eq.s32.totalorder %s16, 1
      %p136 = por %p134, %p135
      %p137 = scmp.ne.s32.totalorder %s129, %s132
      %p138 = scmp.eq.s32.totalorder %s16, 0
      %p139 = por %p137, %p138
      %p140 = scmp.ne.s32.totalorder %s129, %s132
      %p141 = scmp.eq.s32.totalorder %s21, 1
      %p142 = por %p140, %p141
      %p143 = scmp.ne.s32.totalorder %s132, %s133
      %p144 = scmp.eq.s32.totalorder %s21, 0
      %p145 = por %p143, %p144
      %p146 = scmp.ne.s32.totalorder %s132, %s133
      %p147 = scmp.eq.s32.totalorder %s22, 1
      %p148 = por %p146, %p147
      %p150 = scmp.ne.s32.totalorder %s133, %s149
      %p151 = scmp.eq.s32.totalorder %s22, 0
      %p152 = por %p150, %p151
      %p153 = scmp.le.s32.totalorder 1, %s16
      %p154 = scmp.lt.s32.totalorder %s16, 3
      %p155 = pnand %p153, %p154
      %p156 = pneg %p155
      // Predicated region
      $region9: #{tpu_custom_call.1} parent=5 // pred_check
        _
      $region10: #{tpu_custom_call.1} parent=5 // pred_check_branch
        %158 = sbr.rel (%p155) target = $region12
      $region11: #{tpu_custom_call.1} parent=5 // pred_region
        %s159 = ssub.s32 %s16, 1
        // Predicated region
        $region13: #{tpu_custom_call.1} parent=11 // pred_check
          %p160 = pneg %p63
        $region14: #{tpu_custom_call.1} parent=11 // pred_check_branch
          %162 = sbr.rel (%p160) target = $region16
        $region15: #{tpu_custom_call.1} parent=11 // pred_region
          %s163 = smul.u32 4, %s28
          %s165 = ssub.s32 512, 512
          %166 = vsyncadd [#allocation3], %s165
          %s167 = smul.addr %s26, 4
          %s168 = sadd.s32 %s163, %s167
          %s169 = smul.addr %s168, 128
          %s170 = scalar_lea.hbm %s0, %s169
          %s172 = sshll.u32 [#allocation2], 4
          %s173 = int_to_ptr.vmem [resolvable:$true] %s172
          %175 = dma.hbm_to_vmem [thread:$0]  %s170, 512, %s173, [#allocation3]
        $region16: #{tpu_custom_call.1} parent=11 // pred_fallthru
          _
      $region12: #{tpu_custom_call.1} parent=5 // pred_fallthru
        _
      %p176 = scmp.lt.s32.totalorder %s16, 2
      // Predicated region
      $region17: #{tpu_custom_call.1} parent=5 // pred_check
        %p177 = pneg %p176
      $region18: #{tpu_custom_call.1} parent=5 // pred_check_branch
        %179 = sbr.rel (%p177) target = $region20
      $region19: #{tpu_custom_call.1} parent=5 // pred_region
        // Predicated region
        $region21: #{tpu_custom_call.1} parent=19 // pred_check
          %p180 = pneg %p85
        $region22: #{tpu_custom_call.1} parent=19 // pred_check_branch
          %182 = sbr.rel (%p180) target = $region24
        $region23: #{tpu_custom_call.1} parent=19 // pred_region
          %s183 = sand.u32 %s75, 1
          %s184 = scalar_lea.sflag [#allocation6], %s183
          %s185 = sand.u32 %s75, 1
          %s186 = smul.addr %s185, 1024
          %s187 = scalar_lea.vmem [#allocation5], %s186
          %s188 = smul.u32 64, %s25
          %s189 = smul.u32 2, %s24
          %s191 = ssub.s32 16384, 16384
          %192 = vsyncadd %s184, %s191
          %s193 = smul.addr %s188, 4
          %s194 = sadd.s32 %s189, %s193
          %s195 = smul.addr %s194, 128
          %s196 = scalar_lea.hbm %s1, %s195
          %s197 = sshll.u32 %s187, 4
          %s198 = int_to_ptr.vmem [resolvable:$true] %s197
          %203 = dma.hbm_to_vmem [thread:$0]  %s196, 16384, %s198, %s184, 512, 256, 16
        $region24: #{tpu_custom_call.1} parent=19 // pred_fallthru
          _
        // Predicated region
        $region25: #{tpu_custom_call.1} parent=19 // pred_check
          %p204 = pneg %p111
        $region26: #{tpu_custom_call.1} parent=19 // pred_check_branch
          %206 = sbr.rel (%p204) target = $region28
        $region27: #{tpu_custom_call.1} parent=19 // pred_region
          %s207 = smul.u32 2, %s24
          %p208 = scmp.lt.s32.totalorder %s207, 3
          %s209 = scalar_select %p208, %s207, 3
          %s210 = scalar_lea.vmem %s2, %s209
          %s211 = smul.u32 2, %s24
        $region28: #{tpu_custom_call.1} parent=19 // pred_fallthru
          _
      $region20: #{tpu_custom_call.1} parent=5 // pred_fallthru
        _
      %p212 = scmp.le.s32.totalorder 1, %s16
      %p213 = scmp.lt.s32.totalorder %s16, 3
      %p214 = pnand %p212, %p213
      %p215 = pneg %p214
      // Predicated region
      $region29: #{tpu_custom_call.1} parent=5 // pred_check
        _
      $region30: #{tpu_custom_call.1} parent=5 // pred_check_branch
        %217 = sbr.rel (%p214) target = $region32
      $region31: #{tpu_custom_call.1} parent=5 // pred_region
        %s218 = ssub.s32 %s16, 1
        // Predicated region
        $region33: #{tpu_custom_call.1} parent=31 // pred_check
          %p219 = pneg %p63
        $region34: #{tpu_custom_call.1} parent=31 // pred_check_branch
          %221 = sbr.rel (%p219) target = $region36
        $region35: #{tpu_custom_call.1} parent=31 // pred_region
          %222 = dma.done [#allocation3], 512
        $region36: #{tpu_custom_call.1} parent=31 // pred_fallthru
          _
        %s223 = sand.u32 %s78, 1
        %s224 = scalar_lea.sflag [#allocation6], %s223
        %s225 = sand.u32 %s78, 1
        %s226 = smul.addr %s225, 1024
        %s227 = scalar_lea.vmem [#allocation5], %s226
        // Predicated region
        $region37: #{tpu_custom_call.1} parent=31 // pred_check
          %p228 = pneg %p91
        $region38: #{tpu_custom_call.1} parent=31 // pred_check_branch
          %230 = sbr.rel (%p228) target = $region40
        $region39: #{tpu_custom_call.1} parent=31 // pred_region
          %231 = dma.done %s224, 16384
        $region40: #{tpu_custom_call.1} parent=31 // pred_fallthru
          _
        %p232 = pneg %p63
        %p233 = pneg %p60
        %s234 = sand.u32 %s78, 1
        %s235 = scalar_lea.sflag [#allocation6], %s234
        %s236 = sand.u32 %s78, 1
        %s237 = smul.addr %s236, 1024
        %s238 = scalar_lea.vmem [#allocation5], %s237
        %p239 = pneg %p91
        %p240 = pneg %p88
        %s241 = smul.u32 2, %s27
        %p242 = scmp.lt.s32.totalorder %s241, 3
        %s243 = scalar_select %p242, %s241, 3
        %s244 = scalar_lea.vmem %s2, %s243
        %p245 = pneg %p117
        %p246 = pneg %p114
        %p247 = pneg %p145
        %p248 = pneg %p142
        %s249 = sand.u32 %s132, 1
        %s250 = scalar_lea.sflag [#allocation4], %s249
        %s251 = sand.u32 %s132, 1
        %s252 = smul.addr %s251, 16
        %s253 = scalar_lea.vmem [#allocation7], %s252
        %s254 = smul.u32 4, %s28
        %s255 = smul.u32 64, %s28
        %s256 = smul.u32 2, %s27
        %s257 = smul.u32 2, %s27
        %p258 = scmp.lt.s32.totalorder %s257, 3
        %s259 = scalar_select %p258, %s257, 3
        %s260 = scalar_lea.vmem %s2, %s259
        %s261 = smul.u32 2, %s27
        %s262 = smul.u32 2, %s27
        %p263 = scmp.eq.s32.totalorder %s28, 0
        // Predicated region
        $region41: #{tpu_custom_call.1} parent=31 // pred_check
          %p264 = pneg %p263
        $region42: #{tpu_custom_call.1} parent=31 // pred_check_branch
          %266 = sbr.rel (%p264) target = $region44
        $region43: #{tpu_custom_call.1} parent=31 // pred_region
          %v267 = vld [vmem:[%s260] sm:$0x3]
          %v269 = vlaneseq
          %v270 = vshrl.u32 %v269, 7
          %v271 = vsub.s32 0, %v270
          %v272 = vrot.slane %v267, %v271
          %v273 = vlaneseq
          %v274 = vshrl.u32 %v273, 7
          %v275 = vsub.s32 1, %v274
          %v276 = vrot.slane %v267, %v275
          %279 = vst [vmem:[%s253] sm:$0xff] %v272
          %280 = vst [vmem:[%s253 + $0x8] sm:$0xff] %v276
        $region44: #{tpu_custom_call.1} parent=31 // pred_fallthru
          _
        %v281 = vld [vmem:[%s253] sm:$0xff]
        %v282 = vld [vmem:[%s253 + $0x8] sm:$0xff]
        %v283 = vld [vmem:[#allocation2] sm:$0xff]
        %v284 = vld [vmem:[#allocation2 + $0x8] sm:$0xff]
        %v285 = vld [vmem:[#allocation2 + $0x10] sm:$0xff]
        %v286 = vld [vmem:[#allocation2 + $0x18] sm:$0xff]
        %v287 = vld [vmem:[%s227] sm:$0xff]
        %v288 = vld [vmem:[%s227 + $0x8] sm:$0xff]
        %v289 = vld [vmem:[%s227 + $0x10] sm:$0xff]
        %v290 = vld [vmem:[%s227 + $0x18] sm:$0xff]
        %v291 = vld [vmem:[%s227 + $0x20] sm:$0xff]
        %v292 = vld [vmem:[%s227 + $0x28] sm:$0xff]
        %v293 = vld [vmem:[%s227 + $0x30] sm:$0xff]
        %v294 = vld [vmem:[%s227 + $0x38] sm:$0xff]
        %v295 = vld [vmem:[%s227 + $0x40] sm:$0xff]
        %v296 = vld [vmem:[%s227 + $0x48] sm:$0xff]
        %v297 = vld [vmem:[%s227 + $0x50] sm:$0xff]
        %v298 = vld [vmem:[%s227 + $0x58] sm:$0xff]
        %v299 = vld [vmem:[%s227 + $0x60] sm:$0xff]
        %v300 = vld [vmem:[%s227 + $0x68] sm:$0xff]
        %v301 = vld [vmem:[%s227 + $0x70] sm:$0xff]
        %v302 = vld [vmem:[%s227 + $0x78] sm:$0xff]
        %v303 = vld [vmem:[%s227 + $0x80] sm:$0xff]
        %v304 = vld [vmem:[%s227 + $0x88] sm:$0xff]
        %v305 = vld [vmem:[%s227 + $0x90] sm:$0xff]
        %v306 = vld [vmem:[%s227 + $0x98] sm:$0xff]
        %v307 = vld [vmem:[%s227 + $0xa0] sm:$0xff]
        %v308 = vld [vmem:[%s227 + $0xa8] sm:$0xff]
        %v309 = vld [vmem:[%s227 + $0xb0] sm:$0xff]
        %v310 = vld [vmem:[%s227 + $0xb8] sm:$0xff]
        %v311 = vld [vmem:[%s227 + $0xc0] sm:$0xff]
        %v312 = vld [vmem:[%s227 + $0xc8] sm:$0xff]
        %v313 = vld [vmem:[%s227 + $0xd0] sm:$0xff]
        %v314 = vld [vmem:[%s227 + $0xd8] sm:$0xff]
        %v315 = vld [vmem:[%s227 + $0xe0] sm:$0xff]
        %v316 = vld [vmem:[%s227 + $0xe8] sm:$0xff]
        %v317 = vld [vmem:[%s227 + $0xf0] sm:$0xff]
        %v318 = vld [vmem:[%s227 + $0xf8] sm:$0xff]
        %v319 = vld [vmem:[%s227 + $0x100] sm:$0xff]
        %v320 = vld [vmem:[%s227 + $0x108] sm:$0xff]
        %v321 = vld [vmem:[%s227 + $0x110] sm:$0xff]
        %v322 = vld [vmem:[%s227 + $0x118] sm:$0xff]
        %v323 = vld [vmem:[%s227 + $0x120] sm:$0xff]
        %v324 = vld [vmem:[%s227 + $0x128] sm:$0xff]
        %v325 = vld [vmem:[%s227 + $0x130] sm:$0xff]
        %v326 = vld [vmem:[%s227 + $0x138] sm:$0xff]
        %v327 = vld [vmem:[%s227 + $0x140] sm:$0xff]
        %v328 = vld [vmem:[%s227 + $0x148] sm:$0xff]
        %v329 = vld [vmem:[%s227 + $0x150] sm:$0xff]
        %v330 = vld [vmem:[%s227 + $0x158] sm:$0xff]
        %v331 = vld [vmem:[%s227 + $0x160] sm:$0xff]
        %v332 = vld [vmem:[%s227 + $0x168] sm:$0xff]
        %v333 = vld [vmem:[%s227 + $0x170] sm:$0xff]
        %v334 = vld [vmem:[%s227 + $0x178] sm:$0xff]
        %v335 = vld [vmem:[%s227 + $0x180] sm:$0xff]
        %v336 = vld [vmem:[%s227 + $0x188] sm:$0xff]
        %v337 = vld [vmem:[%s227 + $0x190] sm:$0xff]
        %v338 = vld [vmem:[%s227 + $0x198] sm:$0xff]
        %v339 = vld [vmem:[%s227 + $0x1a0] sm:$0xff]
        %v340 = vld [vmem:[%s227 + $0x1a8] sm:$0xff]
        %v341 = vld [vmem:[%s227 + $0x1b0] sm:$0xff]
        %v342 = vld [vmem:[%s227 + $0x1b8] sm:$0xff]
        %v343 = vld [vmem:[%s227 + $0x1c0] sm:$0xff]
        %v344 = vld [vmem:[%s227 + $0x1c8] sm:$0xff]
        %v345 = vld [vmem:[%s227 + $0x1d0] sm:$0xff]
        %v346 = vld [vmem:[%s227 + $0x1d8] sm:$0xff]
        %v347 = vld [vmem:[%s227 + $0x1e0] sm:$0xff]
        %v348 = vld [vmem:[%s227 + $0x1e8] sm:$0xff]
        %v349 = vld [vmem:[%s227 + $0x1f0] sm:$0xff]
        %v350 = vld [vmem:[%s227 + $0x1f8] sm:$0xff]
        %v351 = vld [vmem:[%s227 + $0x200] sm:$0xff]
        %v352 = vld [vmem:[%s227 + $0x208] sm:$0xff]
        %v353 = vld [vmem:[%s227 + $0x210] sm:$0xff]
        %v354 = vld [vmem:[%s227 + $0x218] sm:$0xff]
        %v355 = vld [vmem:[%s227 + $0x220] sm:$0xff]
        %v356 = vld [vmem:[%s227 + $0x228] sm:$0xff]
        %v357 = vld [vmem:[%s227 + $0x230] sm:$0xff]
        %v358 = vld [vmem:[%s227 + $0x238] sm:$0xff]
        %v359 = vld [vmem:[%s227 + $0x240] sm:$0xff]
        %v360 = vld [vmem:[%s227 + $0x248] sm:$0xff]
        %v361 = vld [vmem:[%s227 + $0x250] sm:$0xff]
        %v362 = vld [vmem:[%s227 + $0x258] sm:$0xff]
        %v363 = vld [vmem:[%s227 + $0x260] sm:$0xff]
        %v364 = vld [vmem:[%s227 + $0x268] sm:$0xff]
        %v365 = vld [vmem:[%s227 + $0x270] sm:$0xff]
        %v366 = vld [vmem:[%s227 + $0x278] sm:$0xff]
        %v367 = vld [vmem:[%s227 + $0x280] sm:$0xff]
        %v368 = vld [vmem:[%s227 + $0x288] sm:$0xff]
        %v369 = vld [vmem:[%s227 + $0x290] sm:$0xff]
        %v370 = vld [vmem:[%s227 + $0x298] sm:$0xff]
        %v371 = vld [vmem:[%s227 + $0x2a0] sm:$0xff]
        %v372 = vld [vmem:[%s227 + $0x2a8] sm:$0xff]
        %v373 = vld [vmem:[%s227 + $0x2b0] sm:$0xff]
        %v374 = vld [vmem:[%s227 + $0x2b8] sm:$0xff]
        %v375 = vld [vmem:[%s227 + $0x2c0] sm:$0xff]
        %v376 = vld [vmem:[%s227 + $0x2c8] sm:$0xff]
        %v377 = vld [vmem:[%s227 + $0x2d0] sm:$0xff]
        %v378 = vld [vmem:[%s227 + $0x2d8] sm:$0xff]
        %v379 = vld [vmem:[%s227 + $0x2e0] sm:$0xff]
        %v380 = vld [vmem:[%s227 + $0x2e8] sm:$0xff]
        %v381 = vld [vmem:[%s227 + $0x2f0] sm:$0xff]
        %v382 = vld [vmem:[%s227 + $0x2f8] sm:$0xff]
        %v383 = vld [vmem:[%s227 + $0x300] sm:$0xff]
        %v384 = vld [vmem:[%s227 + $0x308] sm:$0xff]
        %v385 = vld [vmem:[%s227 + $0x310] sm:$0xff]
        %v386 = vld [vmem:[%s227 + $0x318] sm:$0xff]
        %v387 = vld [vmem:[%s227 + $0x320] sm:$0xff]
        %v388 = vld [vmem:[%s227 + $0x328] sm:$0xff]
        %v389 = vld [vmem:[%s227 + $0x330] sm:$0xff]
        %v390 = vld [vmem:[%s227 + $0x338] sm:$0xff]
        %v391 = vld [vmem:[%s227 + $0x340] sm:$0xff]
        %v392 = vld [vmem:[%s227 + $0x348] sm:$0xff]
        %v393 = vld [vmem:[%s227 + $0x350] sm:$0xff]
        %v394 = vld [vmem:[%s227 + $0x358] sm:$0xff]
        %v395 = vld [vmem:[%s227 + $0x360] sm:$0xff]
        %v396 = vld [vmem:[%s227 + $0x368] sm:$0xff]
        %v397 = vld [vmem:[%s227 + $0x370] sm:$0xff]
        %v398 = vld [vmem:[%s227 + $0x378] sm:$0xff]
        %v399 = vld [vmem:[%s227 + $0x380] sm:$0xff]
        %v400 = vld [vmem:[%s227 + $0x388] sm:$0xff]
        %v401 = vld [vmem:[%s227 + $0x390] sm:$0xff]
        %v402 = vld [vmem:[%s227 + $0x398] sm:$0xff]
        %v403 = vld [vmem:[%s227 + $0x3a0] sm:$0xff]
        %v404 = vld [vmem:[%s227 + $0x3a8] sm:$0xff]
        %v405 = vld [vmem:[%s227 + $0x3b0] sm:$0xff]
        %v406 = vld [vmem:[%s227 + $0x3b8] sm:$0xff]
        %v407 = vld [vmem:[%s227 + $0x3c0] sm:$0xff]
        %v408 = vld [vmem:[%s227 + $0x3c8] sm:$0xff]
        %v409 = vld [vmem:[%s227 + $0x3d0] sm:$0xff]
        %v410 = vld [vmem:[%s227 + $0x3d8] sm:$0xff]
        %v411 = vld [vmem:[%s227 + $0x3e0] sm:$0xff]
        %v412 = vld [vmem:[%s227 + $0x3e8] sm:$0xff]
        %v413 = vld [vmem:[%s227 + $0x3f0] sm:$0xff]
        %v414 = vld [vmem:[%s227 + $0x3f8] sm:$0xff]
        %415 = vmatprep.subr.mxu0 %v288
        %416 = vmatpush1.msra.mxu0 %v287
        %417 = vmatprep.subr.mxu0 %v290
        %418 = vmatpush1.msra.mxu0 %v289
        %419 = vmatprep.subr.mxu0 %v292
        %420 = vmatpush1.msra.mxu0 %v291
        %421 = vmatprep.subr.mxu0 %v294
        %422 = vmatpush1.msra.mxu0 %v293
        %423 = vmatprep.subr.mxu0 %v296
        %424 = vmatpush1.msra.mxu0 %v295
        %425 = vmatprep.subr.mxu0 %v298
        %426 = vmatpush1.msra.mxu0 %v297
        %427 = vmatprep.subr.mxu0 %v300
        %428 = vmatpush1.msra.mxu0 %v299
        %429 = vmatprep.subr.mxu0 %v302
        %430 = vmatpush1.msra.mxu0 %v301
        %431 = vmatprep.subr.mxu0 %v304
        %432 = vmatpush1.msra.mxu0 %v303
        %433 = vmatprep.subr.mxu0 %v306
        %434 = vmatpush1.msra.mxu0 %v305
        %435 = vmatprep.subr.mxu0 %v308
        %436 = vmatpush1.msra.mxu0 %v307
        %437 = vmatprep.subr.mxu0 %v310
        %438 = vmatpush1.msra.mxu0 %v309
        %439 = vmatprep.subr.mxu0 %v312
        %440 = vmatpush1.msra.mxu0 %v311
        %441 = vmatprep.subr.mxu0 %v314
        %442 = vmatpush1.msra.mxu0 %v313
        %443 = vmatprep.subr.mxu0 %v316
        %444 = vmatpush1.msra.mxu0 %v315
        %445 = vmatprep.subr.mxu0 %v318
        %446 = vmatpush1.msra.mxu0 %v317
        %447 = vmatprep.subr.mxu0 %v320
        %448 = vmatpush1.msra.mxu0 %v319
        %449 = vmatprep.subr.mxu0 %v322
        %450 = vmatpush1.msra.mxu0 %v321
        %451 = vmatprep.subr.mxu0 %v324
        %452 = vmatpush1.msra.mxu0 %v323
        %453 = vmatprep.subr.mxu0 %v326
        %454 = vmatpush1.msra.mxu0 %v325
        %455 = vmatprep.subr.mxu0 %v328
        %456 = vmatpush1.msra.mxu0 %v327
        %457 = vmatprep.subr.mxu0 %v330
        %458 = vmatpush1.msra.mxu0 %v329
        %459 = vmatprep.subr.mxu0 %v332
        %460 = vmatpush1.msra.mxu0 %v331
        %461 = vmatprep.subr.mxu0 %v334
        %462 = vmatpush1.msra.mxu0 %v333
        %463 = vmatprep.subr.mxu0 %v336
        %464 = vmatpush1.msra.mxu0 %v335
        %465 = vmatprep.subr.mxu0 %v338
        %466 = vmatpush1.msra.mxu0 %v337
        %467 = vmatprep.subr.mxu0 %v340
        %468 = vmatpush1.msra.mxu0 %v339
        %469 = vmatprep.subr.mxu0 %v342
        %470 = vmatpush1.msra.mxu0 %v341
        %471 = vmatprep.subr.mxu0 %v344
        %472 = vmatpush1.msra.mxu0 %v343
        %473 = vmatprep.subr.mxu0 %v346
        %474 = vmatpush1.msra.mxu0 %v345
        %475 = vmatprep.subr.mxu0 %v348
        %476 = vmatpush1.msra.mxu0 %v347
        %477 = vmatprep.subr.mxu0 %v350
        %478 = vmatpush1.msra.mxu0 %v349
        %479 = vmatprep.mubr.f32.mxu0 %v284
        %480 = vmatmul.mubr.f32.gmra.mrb[0].mxu0 %v283
        %v481 = vpop.f32.mrb[0].mxu0
        %v482 = vadd.f32 0.0, %v481
        %v483 = vpop.f32.mrb[0].mxu0
        %v484 = vadd.f32 0.0, %v483
        %485 = vdwg.mxu0
        %486 = vmatprep.subr.mxu0 %v352
        %487 = vmatpush1.msra.mxu0 %v351
        %488 = vmatprep.subr.mxu0 %v354
        %489 = vmatpush1.msra.mxu0 %v353
        %490 = vmatprep.subr.mxu0 %v356
        %491 = vmatpush1.msra.mxu0 %v355
        %492 = vmatprep.subr.mxu0 %v358
        %493 = vmatpush1.msra.mxu0 %v357
        %494 = vmatprep.subr.mxu0 %v360
        %495 = vmatpush1.msra.mxu0 %v359
        %496 = vmatprep.subr.mxu0 %v362
        %497 = vmatpush1.msra.mxu0 %v361
        %498 = vmatprep.subr.mxu0 %v364
        %499 = vmatpush1.msra.mxu0 %v363
        %500 = vmatprep.subr.mxu0 %v366
        %501 = vmatpush1.msra.mxu0 %v365
        %502 = vmatprep.subr.mxu0 %v368
        %503 = vmatpush1.msra.mxu0 %v367
        %504 = vmatprep.subr.mxu0 %v370
        %505 = vmatpush1.msra.mxu0 %v369
        %506 = vmatprep.subr.mxu0 %v372
        %507 = vmatpush1.msra.mxu0 %v371
        %508 = vmatprep.subr.mxu0 %v374
        %509 = vmatpush1.msra.mxu0 %v373
        %510 = vmatprep.subr.mxu0 %v376
        %511 = vmatpush1.msra.mxu0 %v375
        %512 = vmatprep.subr.mxu0 %v378
        %513 = vmatpush1.msra.mxu0 %v377
        %514 = vmatprep.subr.mxu0 %v380
        %515 = vmatpush1.msra.mxu0 %v379
        %516 = vmatprep.subr.mxu0 %v382
        %517 = vmatpush1.msra.mxu0 %v381
        %518 = vmatprep.subr.mxu0 %v384
        %519 = vmatpush1.msra.mxu0 %v383
        %520 = vmatprep.subr.mxu0 %v386
        %521 = vmatpush1.msra.mxu0 %v385
        %522 = vmatprep.subr.mxu0 %v388
        %523 = vmatpush1.msra.mxu0 %v387
        %524 = vmatprep.subr.mxu0 %v390
        %525 = vmatpush1.msra.mxu0 %v389
        %526 = vmatprep.subr.mxu0 %v392
        %527 = vmatpush1.msra.mxu0 %v391
        %528 = vmatprep.subr.mxu0 %v394
        %529 = vmatpush1.msra.mxu0 %v393
        %530 = vmatprep.subr.mxu0 %v396
        %531 = vmatpush1.msra.mxu0 %v395
        %532 = vmatprep.subr.mxu0 %v398
        %533 = vmatpush1.msra.mxu0 %v397
        %534 = vmatprep.subr.mxu0 %v400
        %535 = vmatpush1.msra.mxu0 %v399
        %536 = vmatprep.subr.mxu0 %v402
        %537 = vmatpush1.msra.mxu0 %v401
        %538 = vmatprep.subr.mxu0 %v404
        %539 = vmatpush1.msra.mxu0 %v403
        %540 = vmatprep.subr.mxu0 %v406
        %541 = vmatpush1.msra.mxu0 %v405
        %542 = vmatprep.subr.mxu0 %v408
        %543 = vmatpush1.msra.mxu0 %v407
        %544 = vmatprep.subr.mxu0 %v410
        %545 = vmatpush1.msra.mxu0 %v409
        %546 = vmatprep.subr.mxu0 %v412
        %547 = vmatpush1.msra.mxu0 %v411
        %548 = vmatprep.subr.mxu0 %v414
        %549 = vmatpush1.msra.mxu0 %v413
        %550 = vmatprep.mubr.f32.mxu0 %v286
        %551 = vmatmul.mubr.f32.gmra.mrb[0].mxu0 %v285
        %v552 = vpop.f32.mrb[0].mxu0
        %v553 = vadd.f32 %v482, %v552
        %v554 = vpop.f32.mrb[0].mxu0
        %v555 = vadd.f32 %v484, %v554
        %556 = vdwg.mxu0
        %v557 = vadd.f32 %v281, %v553
        %v558 = vadd.f32 %v282, %v555
        %559 = vst [vmem:[%s253] sm:$0xff] %v557
        %560 = vst [vmem:[%s253 + $0x8] sm:$0xff] %v558
        %s561 = sand.u32 %s132, 1
        %s562 = scalar_lea.sflag [#allocation4], %s561
        %s563 = sand.u32 %s132, 1
        %s564 = smul.addr %s563, 16
        %s565 = scalar_lea.vmem [#allocation7], %s564
        // Predicated region
        $region45: #{tpu_custom_call.1} parent=31 // pred_check
          %p566 = pneg %p142
        $region46: #{tpu_custom_call.1} parent=31 // pred_check_branch
          %568 = sbr.rel (%p566) target = $region48
        $region47: #{tpu_custom_call.1} parent=31 // pred_region
          %s569 = smul.u32 2, %s27
          %s571 = ssub.s32 256, 256
          %572 = vsyncadd %s562, %s571
          %s573 = smul.addr %s26, 4
          %s574 = sadd.s32 %s569, %s573
          %s575 = smul.addr %s574, 128
          %s576 = scalar_lea.hbm %s3, %s575
          %s578 = sshll.u32 %s565, 4
          %s579 = int_to_ptr.vmem [resolvable:$true] %s578
          %581 = dma.vmem_to_hbm [thread:$0]  %s579, 256, %s576, %s562
        $region48: #{tpu_custom_call.1} parent=31 // pred_fallthru
          _
      $region32: #{tpu_custom_call.1} parent=5 // pred_fallthru
        _
      %p582 = scmp.le.s32.totalorder 2, %s16
      // Predicated region
      $region49: #{tpu_custom_call.1} parent=5 // pred_check
        %p583 = pneg %p582
      $region50: #{tpu_custom_call.1} parent=5 // pred_check_branch
        %585 = sbr.rel (%p583) target = $region52
      $region51: #{tpu_custom_call.1} parent=5 // pred_region
        %s586 = ssub.s32 %s16, 2
        // Predicated region
        $region53: #{tpu_custom_call.1} parent=51 // pred_check
          %p587 = pneg %p148
        $region54: #{tpu_custom_call.1} parent=51 // pred_check_branch
          %589 = sbr.rel (%p587) target = $region56
        $region55: #{tpu_custom_call.1} parent=51 // pred_region
          %s590 = sand.u32 %s133, 1
          %s591 = scalar_lea.sflag [#allocation4], %s590
          %s592 = sand.u32 %s133, 1
          %s593 = smul.addr %s592, 16
          %s594 = scalar_lea.vmem [#allocation7], %s593
          %595 = dma.done %s591, 256
        $region56: #{tpu_custom_call.1} parent=51 // pred_fallthru
          _
      $region52: #{tpu_custom_call.1} parent=5 // pred_fallthru
        _
    $region6: #{tpu_custom_call.1} parent=1 // loop_footer
      %s20 = sadd.s32 1, %s16
    $region7: #{tpu_custom_call.1} parent=1 // loop_footer_branch
      %15 = sbr.rel target = $region3
    $region8: #{tpu_custom_call.1} parent=1 // loop_exit
      _
    %596 = vsyncpa [#allocation3], 1
    %s597 = scalar_lea.sflag [#allocation3], 1
    %598 = vsyncpa %s597, 1
    %599 = vsyncpa [#allocation6], 1
    %s600 = scalar_lea.sflag [#allocation6], 1
    %601 = vsyncpa %s600, 1
    %602 = vsyncpa [#allocation4], 1
    %s603 = scalar_lea.sflag [#allocation4], 1
    %604 = vsyncpa %s603, 1

</llo_original>
